<compile_context>
chip_gen: v7x
topology: tpu7x:2x2x1
jax: 0.10.0
libtpu: 0.0.40
codegen_flags: <defaults>
</compile_context>

<pallas_src>
import jax
import jax.numpy as jnp
from jax.experimental import pallas as pl
from jax.experimental.pallas import tpu as pltpu


def basic_cnn_kernel(
    x_ref,                       # (TN, 12*jetF)  flattened NLC input (matmul dtype)
    w1_ref, b1_ref,              # (12*jetF, 6*dijet) block-diag conv1, bias (1, 6*dijet) f32
    w2_ref, b2_ref,              # (6*dijet, 3*quadjet) block-diag conv2, bias (1, 3*quadjet)
    w3_ref, b3_ref,              # (3*quadjet, comb) conv3 (3 taps fused on K), bias (1, comb)
    l1w_ref, l1b_ref,            # (comb, nodes), (1, nodes)
    l2w_ref, l2b_ref,            # (nodes, nodes), (1, nodes)
    l3w_ref, l3b_ref,            # (nodes, nodes), (1, nodes)
    l4w_ref, l4b_ref,            # (nodes, 1), (1, 1)
    o_ref,                       # (TN, 1)
):
    f32 = jnp.float32
    cdt = w1_ref.dtype           # matmul operand dtype (f32 or bf16)

    def layer(h, w_ref, b_ref, relu=True):
        y = jnp.dot(h.astype(cdt), w_ref[...], preferred_element_type=f32) + b_ref[...]
        return jnp.maximum(y, 0.0) if relu else y

    h = layer(x_ref[...], w1_ref, b1_ref)   # conv1 + ReLU (6 output steps, block-diag)
    h = layer(h, w2_ref, b2_ref)            # conv2 + ReLU (3 output steps, block-diag)
    h = layer(h, w3_ref, b3_ref)            # conv3 + ReLU -> (TN, comb) == x.view(N, -1)
    h = layer(h, l1w_ref, l1b_ref)          # line1 + ReLU
    h = layer(h, l2w_ref, l2b_ref)          # line2 + ReLU (Dropout = identity at inference)
    h = layer(h, l3w_ref, l3b_ref)          # line3 + ReLU (Dropout = identity at inference)
    # TODO(synk): the (TN, 1) store is lane-sparse (masked partial store); only
    # worth widening/transposing if the epilogue ever shows in profiles.
    o_ref[...] = layer(h, l4w_ref, l4b_ref, relu=False)


def _block_diag(block, n):
    """Block-diagonal matrix with `n` copies of `block` (plain-JAX glue)."""
    r, c = block.shape
    out = jnp.zeros((n * r, n * c), block.dtype)
    for i in range(n):
        out = out.at[i * r:(i + 1) * r, i * c:(i + 1) * c].set(block)
    return out


def _round_up(v, m):
    return ((v + m - 1) // m) * m


def basic_cnn_forward(x_ncw, a, params, *, tile_n=2048, matmul_dtype=jnp.float32):
    """x_ncw: (N, jetFeatures, 12) float32 (PyTorch NCW). `a` is unused, as in
    the reference forward."""
    del a
    (w1, b1, w2, b2, w3, b3,
     l1w, l1b, l2w, l2b, l3w, l3b, l4w, l4b) = params

    N, jetF, L = x_ncw.shape
    assert L == 12, "basicCNN requires sequence length 12 (12 -> 6 -> 3 -> 1)"

    f32 = jnp.float32
    mdt = matmul_dtype

    # --- glue (plain JAX): layout + conv->matmul weight prep -----------------
    # (N, C, 12) -> (N, 12, C) -> (N, 12*C); lane index = t*jetF + c.
    x_flat = jnp.transpose(x_ncw, (0, 2, 1)).reshape(N, L * jetF).astype(mdt)

    # conv1 (kernel 2, stride 2): block-diagonal over the 6 output time steps.
    w1cat = jnp.concatenate([w1[:, :, 0].T, w1[:, :, 1].T], axis=0)     # (2*jetF, dijet)
    w1bd = _block_diag(w1cat, 6).astype(mdt)                            # (12*jetF, 6*dijet)
    b1t = jnp.tile(b1, 6)[None, :].astype(f32)                          # (1, 6*dijet)

    # conv2 (kernel 2, stride 2): block-diagonal over the 3 output time steps.
    w2cat = jnp.concatenate([w2[:, :, 0].T, w2[:, :, 1].T], axis=0)     # (2*dijet, quadjet)
    w2bd = _block_diag(w2cat, 3).astype(mdt)                            # (6*dijet, 3*quadjet)
    b2t = jnp.tile(b2, 3)[None, :].astype(f32)                          # (1, 3*quadjet)

    # conv3 (kernel 3, stride 1, single output step): 3 taps fused along K.
    w3cat = jnp.concatenate([w3[:, :, k].T for k in range(3)], axis=0)  # (3*quadjet, comb)
    w3cat = w3cat.astype(mdt)
    b3r = b3[None, :].astype(f32)

    weight_args = (
        w1bd, b1t, w2bd, b2t, w3cat, b3r,
        l1w.T.astype(mdt), l1b[None, :].astype(f32),
        l2w.T.astype(mdt), l2b[None, :].astype(f32),
        l3w.T.astype(mdt), l3b[None, :].astype(f32),
        l4w.T.astype(mdt), l4b[None, :].astype(f32),
    )

    # --- batch tiling ---------------------------------------------------------
    tn = min(tile_n, _round_up(max(N, 1), 8))
    n_pad = _round_up(N, tn)
    if n_pad != N:
        x_flat = jnp.pad(x_flat, ((0, n_pad - N), (0, 0)))
    grid = (n_pad // tn,)

    x_spec = pl.BlockSpec((tn, L * jetF), lambda i: (i, 0))
    w_specs = [pl.BlockSpec(w.shape, lambda i: (0, 0)) for w in weight_args]
    out_spec = pl.BlockSpec((tn, 1), lambda i: (i, 0))

    out = pl.pallas_call(
        basic_cnn_kernel,
        out_shape=jax.ShapeDtypeStruct((n_pad, 1), f32),
        grid=grid,
        in_specs=[x_spec] + w_specs,
        out_specs=out_spec,
        compiler_params=pltpu.CompilerParams(
            dimension_semantics=("parallel",),          # shard batch tiles across TCs (v7x)
            vmem_limit_bytes=32 * 1024 * 1024,          # explicit scoped-VMEM budget
        ),
    )(x_flat, *weight_args)
    return out[:N]


# ---------------------------------------------------------------------------
# Pure-JAX reference (independent path via lax.conv_general_dilated)
# ---------------------------------------------------------------------------
def basic_cnn_reference(x_ncw, params):
    (w1, b1, w2, b2, w3, b3,
     l1w, l1b, l2w, l2b, l3w, l3b, l4w, l4b) = params

    def conv1d(x, w, b, stride):
        y = jax.lax.conv_general_dilated(
            x, w, window_strides=(stride,), padding="VALID",
            dimension_numbers=("NCH", "OIH", "NCH"))
        return y + b[None, :, None]

    h = jax.nn.relu(conv1d(x_ncw, w1, b1, 2))
    h = jax.nn.relu(conv1d(h, w2, b2, 2))
    h = jax.nn.relu(conv1d(h, w3, b3, 1))
    h = h.reshape(h.shape[0], -1)
    h = jax.nn.relu(h @ l1w.T + l1b)
    h = jax.nn.relu(h @ l2w.T + l2b)   # dropout: identity (eval)
    h = jax.nn.relu(h @ l3w.T + l3b)
    return h @ l4w.T + l4b


def init_params(key, jetF, dijet, quadjet, comb, nodes):
    ks = jax.random.split(key, 14)

    def u(k, shape, fan_in):
        bound = 1.0 / jnp.sqrt(jnp.float32(fan_in))
        return jax.random.uniform(k, shape, jnp.float32, -bound, bound)

    w1 = u(ks[0], (dijet, jetF, 2), jetF * 2);      b1 = u(ks[1], (dijet,),   jetF * 2)
    w2 = u(ks[2], (quadjet, dijet, 2), dijet * 2);  b2 = u(ks[3], (quadjet,), dijet * 2)
    w3 = u(ks[4], (comb, quadjet, 3), quadjet * 3); b3 = u(ks[5], (comb,),    quadjet * 3)
    l1w = u(ks[6], (nodes, comb), comb);    l1b = u(ks[7], (nodes,), comb)
    l2w = u(ks[8], (nodes, nodes), nodes);  l2b = u(ks[9], (nodes,), nodes)
    l3w = u(ks[10], (nodes, nodes), nodes); l3b = u(ks[11], (nodes,), nodes)
    l4w = u(ks[12], (1, nodes), nodes);     l4b = u(ks[13], (1,), nodes)
    return (w1, b1, w2, b2, w3, b3, l1w, l1b, l2w, l2b, l3w, l3b, l4w, l4b)


if __name__ == "__main__":
    # basicCNN(jetFeatures=4, dijetFeatures=8, quadjetFeatures=16,
    #          combinatoricFeatures=32, nodes=32, pDropout=0.4)
    jetF, dijet, quadjet, comb, nodes = 4, 8, 16, 32, 32
    seq = 12

    key = jax.random.PRNGKey(0)
    k_x, k_a, k_p, k_x2 = jax.random.split(key, 4)
    params = init_params(k_p, jetF, dijet, quadjet, comb, nodes)

    # Small-shape check (batch=2, single tile), f32 matmuls.
    x = jax.random.normal(k_x, (2, jetF, seq), jnp.float32)   # NCW, like PyTorch
    a = jax.random.normal(k_a, (2, jetF), jnp.float32)        # unused in forward
    out = jax.block_until_ready(basic_cnn_forward(x, a, params))
    ref = jax.block_until_ready(basic_cnn_reference(x, params))
    assert out.shape == (2, 1)
    assert jnp.allclose(out, ref, atol=1e-4, rtol=1e-4), (out, ref)

    # Multi-tile check: exercises the batch grid, constant weight index_maps
    # and the remainder-tile zero-padding path.
    x2 = jax.random.normal(k_x2, (130, jetF, seq), jnp.float32)
    out2 = jax.block_until_ready(basic_cnn_forward(x2, None, params, tile_n=32))
    ref2 = jax.block_until_ready(basic_cnn_reference(x2, params))
    assert out2.shape == (130, 1)
    assert jnp.allclose(out2, ref2, atol=1e-4, rtol=1e-4)

    # bf16 matmul operands (v6e/v7x fast path); accumulation/epilogue stay f32.
    out3 = jax.block_until_ready(
        basic_cnn_forward(x2, None, params, tile_n=64, matmul_dtype=jnp.bfloat16))
    assert out3.shape == (130, 1)
    assert jnp.allclose(out3, ref2, atol=5e-2, rtol=5e-2)

    print("KERNEL_OK")
</pallas_src>

<mosaic_0001>
module attributes {stable_mosaic.version = 11 : i64} {
  func.func @basic_cnn_kernel(%arg0: i32, %arg1: memref<8x48xf32, #tpu.memory_space<vmem>>, %arg2: memref<48x48xf32, #tpu.memory_space<vmem>>, %arg3: memref<1x48xf32, #tpu.memory_space<vmem>>, %arg4: memref<48x48xf32, #tpu.memory_space<vmem>>, %arg5: memref<1x48xf32, #tpu.memory_space<vmem>>, %arg6: memref<48x32xf32, #tpu.memory_space<vmem>>, %arg7: memref<1x32xf32, #tpu.memory_space<vmem>>, %arg8: memref<32x32xf32, #tpu.memory_space<vmem>>, %arg9: memref<1x32xf32, #tpu.memory_space<vmem>>, %arg10: memref<32x32xf32, #tpu.memory_space<vmem>>, %arg11: memref<1x32xf32, #tpu.memory_space<vmem>>, %arg12: memref<32x32xf32, #tpu.memory_space<vmem>>, %arg13: memref<1x32xf32, #tpu.memory_space<vmem>>, %arg14: memref<32x1xf32, #tpu.memory_space<vmem>>, %arg15: memref<1x1xf32, #tpu.memory_space<vmem>>, %arg16: memref<8x1xf32, #tpu.memory_space<vmem>>) attributes {dimension_semantics = [#tpu.dimension_semantics<parallel>], iteration_bounds = array<i64: 1>, scalar_prefetch = 0 : i64, scratch_operands = 0 : i64, tpu.core_type = #tpu.core_type<tc>, window_params = [{transform_indices = @transform_0, window_bounds = array<i64: 8, 48>}, {pipeline_mode = #tpu.pipeline_mode<synchronous>, transform_indices = @transform_1, window_bounds = array<i64: 48, 48>}, {pipeline_mode = #tpu.pipeline_mode<synchronous>, transform_indices = @transform_2, window_bounds = array<i64: 1, 48>}, {pipeline_mode = #tpu.pipeline_mode<synchronous>, transform_indices = @transform_3, window_bounds = array<i64: 48, 48>}, {pipeline_mode = #tpu.pipeline_mode<synchronous>, transform_indices = @transform_4, window_bounds = array<i64: 1, 48>}, {pipeline_mode = #tpu.pipeline_mode<synchronous>, transform_indices = @transform_5, window_bounds = array<i64: 48, 32>}, {pipeline_mode = #tpu.pipeline_mode<synchronous>, transform_indices = @transform_6, window_bounds = array<i64: 1, 32>}, {pipeline_mode = #tpu.pipeline_mode<synchronous>, transform_indices = @transform_7, window_bounds = array<i64: 32, 32>}, {pipeline_mode = #tpu.pipeline_mode<synchronous>, transform_indices = @transform_8, window_bounds = array<i64: 1, 32>}, {pipeline_mode = #tpu.pipeline_mode<synchronous>, transform_indices = @transform_9, window_bounds = array<i64: 32, 32>}, {pipeline_mode = #tpu.pipeline_mode<synchronous>, transform_indices = @transform_10, window_bounds = array<i64: 1, 32>}, {pipeline_mode = #tpu.pipeline_mode<synchronous>, transform_indices = @transform_11, window_bounds = array<i64: 32, 32>}, {pipeline_mode = #tpu.pipeline_mode<synchronous>, transform_indices = @transform_12, window_bounds = array<i64: 1, 32>}, {pipeline_mode = #tpu.pipeline_mode<synchronous>, transform_indices = @transform_13, window_bounds = array<i64: 32, 1>}, {pipeline_mode = #tpu.pipeline_mode<synchronous>, transform_indices = @transform_14, window_bounds = array<i64: 1, 1>}, {transform_indices = @transform_15, window_bounds = array<i64: 8, 1>}]} {
    %c0 = arith.constant 0 : index
    %c0_0 = arith.constant 0 : index
    %0 = vector.load %arg1[%c0, %c0_0] : memref<8x48xf32, #tpu.memory_space<vmem>>, vector<8x48xf32>
    %c0_1 = arith.constant 0 : index
    %c0_2 = arith.constant 0 : index
    %1 = vector.load %arg2[%c0_1, %c0_2] : memref<48x48xf32, #tpu.memory_space<vmem>>, vector<48x48xf32>
    %cst = arith.constant dense<0.000000e+00> : vector<8x48xf32>
    %2 = tpu.matmul %0, %1, %cst {dimension_numbers = #tpu.dot_dimension_numbers<[1], [0], [0], [1], [0, 0, 1, 1], [], []>} : vector<8x48xf32>, vector<48x48xf32>, vector<8x48xf32> -> vector<8x48xf32>
    %c0_3 = arith.constant 0 : index
    %c0_4 = arith.constant 0 : index
    %3 = vector.load %arg3[%c0_3, %c0_4] : memref<1x48xf32, #tpu.memory_space<vmem>>, vector<1x48xf32>
    %4 = vector.broadcast %3 : vector<1x48xf32> to vector<8x48xf32>
    %5 = arith.addf %2, %4 : vector<8x48xf32>
    %cst_5 = arith.constant 0.000000e+00 : f32
    %6 = vector.broadcast %cst_5 : f32 to vector<8x48xf32>
    %7 = arith.maximumf %5, %6 : vector<8x48xf32>
    %c0_6 = arith.constant 0 : index
    %c0_7 = arith.constant 0 : index
    %8 = vector.load %arg4[%c0_6, %c0_7] : memref<48x48xf32, #tpu.memory_space<vmem>>, vector<48x48xf32>
    %cst_8 = arith.constant dense<0.000000e+00> : vector<8x48xf32>
    %9 = tpu.matmul %7, %8, %cst_8 {dimension_numbers = #tpu.dot_dimension_numbers<[1], [0], [0], [1], [0, 0, 1, 1], [], []>} : vector<8x48xf32>, vector<48x48xf32>, vector<8x48xf32> -> vector<8x48xf32>
    %c0_9 = arith.constant 0 : index
    %c0_10 = arith.constant 0 : index
    %10 = vector.load %arg5[%c0_9, %c0_10] : memref<1x48xf32, #tpu.memory_space<vmem>>, vector<1x48xf32>
    %11 = vector.broadcast %10 : vector<1x48xf32> to vector<8x48xf32>
    %12 = arith.addf %9, %11 : vector<8x48xf32>
    %cst_11 = arith.constant 0.000000e+00 : f32
    %13 = vector.broadcast %cst_11 : f32 to vector<8x48xf32>
    %14 = arith.maximumf %12, %13 : vector<8x48xf32>
    %c0_12 = arith.constant 0 : index
    %c0_13 = arith.constant 0 : index
    %15 = vector.load %arg6[%c0_12, %c0_13] : memref<48x32xf32, #tpu.memory_space<vmem>>, vector<48x32xf32>
    %cst_14 = arith.constant dense<0.000000e+00> : vector<8x32xf32>
    %16 = tpu.matmul %14, %15, %cst_14 {dimension_numbers = #tpu.dot_dimension_numbers<[1], [0], [0], [1], [0, 0, 1, 1], [], []>} : vector<8x48xf32>, vector<48x32xf32>, vector<8x32xf32> -> vector<8x32xf32>
    %c0_15 = arith.constant 0 : index
    %c0_16 = arith.constant 0 : index
    %17 = vector.load %arg7[%c0_15, %c0_16] : memref<1x32xf32, #tpu.memory_space<vmem>>, vector<1x32xf32>
    %18 = vector.broadcast %17 : vector<1x32xf32> to vector<8x32xf32>
    %19 = arith.addf %16, %18 : vector<8x32xf32>
    %cst_17 = arith.constant 0.000000e+00 : f32
    %20 = vector.broadcast %cst_17 : f32 to vector<8x32xf32>
    %21 = arith.maximumf %19, %20 : vector<8x32xf32>
    %c0_18 = arith.constant 0 : index
    %c0_19 = arith.constant 0 : index
    %22 = vector.load %arg8[%c0_18, %c0_19] : memref<32x32xf32, #tpu.memory_space<vmem>>, vector<32x32xf32>
    %cst_20 = arith.constant dense<0.000000e+00> : vector<8x32xf32>
    %23 = tpu.matmul %21, %22, %cst_20 {dimension_numbers = #tpu.dot_dimension_numbers<[1], [0], [0], [1], [0, 0, 1, 1], [], []>} : vector<8x32xf32>, vector<32x32xf32>, vector<8x32xf32> -> vector<8x32xf32>
    %c0_21 = arith.constant 0 : index
    %c0_22 = arith.constant 0 : index
    %24 = vector.load %arg9[%c0_21, %c0_22] : memref<1x32xf32, #tpu.memory_space<vmem>>, vector<1x32xf32>
    %25 = vector.broadcast %24 : vector<1x32xf32> to vector<8x32xf32>
    %26 = arith.addf %23, %25 : vector<8x32xf32>
    %cst_23 = arith.constant 0.000000e+00 : f32
    %27 = vector.broadcast %cst_23 : f32 to vector<8x32xf32>
    %28 = arith.maximumf %26, %27 : vector<8x32xf32>
    %c0_24 = arith.constant 0 : index
    %c0_25 = arith.constant 0 : index
    %29 = vector.load %arg10[%c0_24, %c0_25] : memref<32x32xf32, #tpu.memory_space<vmem>>, vector<32x32xf32>
    %cst_26 = arith.constant dense<0.000000e+00> : vector<8x32xf32>
    %30 = tpu.matmul %28, %29, %cst_26 {dimension_numbers = #tpu.dot_dimension_numbers<[1], [0], [0], [1], [0, 0, 1, 1], [], []>} : vector<8x32xf32>, vector<32x32xf32>, vector<8x32xf32> -> vector<8x32xf32>
    %c0_27 = arith.constant 0 : index
    %c0_28 = arith.constant 0 : index
    %31 = vector.load %arg11[%c0_27, %c0_28] : memref<1x32xf32, #tpu.memory_space<vmem>>, vector<1x32xf32>
    %32 = vector.broadcast %31 : vector<1x32xf32> to vector<8x32xf32>
    %33 = arith.addf %30, %32 : vector<8x32xf32>
    %cst_29 = arith.constant 0.000000e+00 : f32
    %34 = vector.broadcast %cst_29 : f32 to vector<8x32xf32>
    %35 = arith.maximumf %33, %34 : vector<8x32xf32>
    %c0_30 = arith.constant 0 : index
    %c0_31 = arith.constant 0 : index
    %36 = vector.load %arg12[%c0_30, %c0_31] : memref<32x32xf32, #tpu.memory_space<vmem>>, vector<32x32xf32>
    %cst_32 = arith.constant dense<0.000000e+00> : vector<8x32xf32>
    %37 = tpu.matmul %35, %36, %cst_32 {dimension_numbers = #tpu.dot_dimension_numbers<[1], [0], [0], [1], [0, 0, 1, 1], [], []>} : vector<8x32xf32>, vector<32x32xf32>, vector<8x32xf32> -> vector<8x32xf32>
    %c0_33 = arith.constant 0 : index
    %c0_34 = arith.constant 0 : index
    %38 = vector.load %arg13[%c0_33, %c0_34] : memref<1x32xf32, #tpu.memory_space<vmem>>, vector<1x32xf32>
    %39 = vector.broadcast %38 : vector<1x32xf32> to vector<8x32xf32>
    %40 = arith.addf %37, %39 : vector<8x32xf32>
    %cst_35 = arith.constant 0.000000e+00 : f32
    %41 = vector.broadcast %cst_35 : f32 to vector<8x32xf32>
    %42 = arith.maximumf %40, %41 : vector<8x32xf32>
    %c0_36 = arith.constant 0 : index
    %c0_37 = arith.constant 0 : index
    %43 = vector.load %arg14[%c0_36, %c0_37] : memref<32x1xf32, #tpu.memory_space<vmem>>, vector<32x1xf32>
    %cst_38 = arith.constant dense<0.000000e+00> : vector<8x1xf32>
    %44 = tpu.matmul %42, %43, %cst_38 {dimension_numbers = #tpu.dot_dimension_numbers<[1], [0], [0], [1], [0, 0, 1, 1], [], []>} : vector<8x32xf32>, vector<32x1xf32>, vector<8x1xf32> -> vector<8x1xf32>
    %c0_39 = arith.constant 0 : index
    %c0_40 = arith.constant 0 : index
    %45 = vector.load %arg15[%c0_39, %c0_40] : memref<1x1xf32, #tpu.memory_space<vmem>>, vector<1x1xf32>
    %46 = vector.broadcast %45 : vector<1x1xf32> to vector<8x1xf32>
    %47 = arith.addf %44, %46 : vector<8x1xf32>
    %c0_41 = arith.constant 0 : index
    %c0_42 = arith.constant 0 : index
    %48 = vector.load %arg16[%c0_41, %c0_42] : memref<8x1xf32, #tpu.memory_space<vmem>>, vector<8x1xf32>
    tpu.vector_store %arg16[%c0_41, %c0_42], %47 {strides = array<i32>} : memref<8x1xf32, #tpu.memory_space<vmem>>, vector<8x1xf32>,
    return
  }
  func.func @transform_0(%arg0: i32) -> (i32, i32) {
    %c0_i32 = arith.constant 0 : i32
    %c0_i32_0 = arith.constant 0 : i32
    return %arg0, %c0_i32 : i32, i32
  }
  func.func @transform_1(%arg0: i32) -> (i32, i32) {
    %c0_i32 = arith.constant 0 : i32
    %c0_i32_0 = arith.constant 0 : i32
    %c0_i32_1 = arith.constant 0 : i32
    return %c0_i32, %c0_i32_0 : i32, i32
  }
  func.func @transform_2(%arg0: i32) -> (i32, i32) {
    %c0_i32 = arith.constant 0 : i32
    %c0_i32_0 = arith.constant 0 : i32
    %c0_i32_1 = arith.constant 0 : i32
    return %c0_i32, %c0_i32_0 : i32, i32
  }
  func.func @transform_3(%arg0: i32) -> (i32, i32) {
    %c0_i32 = arith.constant 0 : i32
    %c0_i32_0 = arith.constant 0 : i32
    %c0_i32_1 = arith.constant 0 : i32
    return %c0_i32, %c0_i32_0 : i32, i32
  }
  func.func @transform_4(%arg0: i32) -> (i32, i32) {
    %c0_i32 = arith.constant 0 : i32
    %c0_i32_0 = arith.constant 0 : i32
    %c0_i32_1 = arith.constant 0 : i32
    return %c0_i32, %c0_i32_0 : i32, i32
  }
  func.func @transform_5(%arg0: i32) -> (i32, i32) {
    %c0_i32 = arith.constant 0 : i32
    %c0_i32_0 = arith.constant 0 : i32
    %c0_i32_1 = arith.constant 0 : i32
    return %c0_i32, %c0_i32_0 : i32, i32
  }
  func.func @transform_6(%arg0: i32) -> (i32, i32) {
    %c0_i32 = arith.constant 0 : i32
    %c0_i32_0 = arith.constant 0 : i32
    %c0_i32_1 = arith.constant 0 : i32
    return %c0_i32, %c0_i32_0 : i32, i32
  }
  func.func @transform_7(%arg0: i32) -> (i32, i32) {
    %c0_i32 = arith.constant 0 : i32
    %c0_i32_0 = arith.constant 0 : i32
    %c0_i32_1 = arith.constant 0 : i32
    return %c0_i32, %c0_i32_0 : i32, i32
  }
  func.func @transform_8(%arg0: i32) -> (i32, i32) {
    %c0_i32 = arith.constant 0 : i32
    %c0_i32_0 = arith.constant 0 : i32
    %c0_i32_1 = arith.constant 0 : i32
    return %c0_i32, %c0_i32_0 : i32, i32
  }
  func.func @transform_9(%arg0: i32) -> (i32, i32) {
    %c0_i32 = arith.constant 0 : i32
    %c0_i32_0 = arith.constant 0 : i32
    %c0_i32_1 = arith.constant 0 : i32
    return %c0_i32, %c0_i32_0 : i32, i32
  }
  func.func @transform_10(%arg0: i32) -> (i32, i32) {
    %c0_i32 = arith.constant 0 : i32
    %c0_i32_0 = arith.constant 0 : i32
    %c0_i32_1 = arith.constant 0 : i32
    return %c0_i32, %c0_i32_0 : i32, i32
  }
  func.func @transform_11(%arg0: i32) -> (i32, i32) {
    %c0_i32 = arith.constant 0 : i32
    %c0_i32_0 = arith.constant 0 : i32
    %c0_i32_1 = arith.constant 0 : i32
    return %c0_i32, %c0_i32_0 : i32, i32
  }
  func.func @transform_12(%arg0: i32) -> (i32, i32) {
    %c0_i32 = arith.constant 0 : i32
    %c0_i32_0 = arith.constant 0 : i32
    %c0_i32_1 = arith.constant 0 : i32
    return %c0_i32, %c0_i32_0 : i32, i32
  }
  func.func @transform_13(%arg0: i32) -> (i32, i32) {
    %c0_i32 = arith.constant 0 : i32
    %c0_i32_0 = arith.constant 0 : i32
    %c0_i32_1 = arith.constant 0 : i32
    return %c0_i32, %c0_i32_0 : i32, i32
  }
  func.func @transform_14(%arg0: i32) -> (i32, i32) {
    %c0_i32 = arith.constant 0 : i32
    %c0_i32_0 = arith.constant 0 : i32
    %c0_i32_1 = arith.constant 0 : i32
    return %c0_i32, %c0_i32_0 : i32, i32
  }
  func.func @transform_15(%arg0: i32) -> (i32, i32) {
    %c0_i32 = arith.constant 0 : i32
    %c0_i32_0 = arith.constant 0 : i32
    return %arg0, %c0_i32 : i32, i32
  }
}

</mosaic_0001>

<llo_original>
// kernel: tpu_custom_call.1
$region0: #{tpu_custom_call.1}
  #allocation0 [shape = 'u32[]', space=smem, size = 0x4, offset = 0x4, fixed_abs, tag = 'smem constant byte address 0x4 - core index']
  #allocation1 [shape = 'u32[144,128]{1,0:T(1,128)}', space=vmem, size = 0x12000, scoped, tag = 'internal scratch']
  #allocation2 [shape = 'f32[1,1]{1,0:T(1,128)S(1)}', space=vmem, size = 0x200, scoped, tag = 'scoped memory for tpu_custom_call.1']
  %s0 = inlined_call_operand.hbm [shape: f32[8,48], index: 0, kind: input, shape index: {}]
  %s1 = inlined_call_operand.vmem [shape: f32[48,48], index: 1, kind: input, shape index: {}]
  %s2 = inlined_call_operand.hbm [shape: f32[1,48], index: 2, kind: input, shape index: {}]
  %s3 = inlined_call_operand.vmem [shape: f32[48,48], index: 3, kind: input, shape index: {}]
  %s4 = inlined_call_operand.vmem [shape: f32[1,48], index: 4, kind: input, shape index: {}]
  %s5 = inlined_call_operand.vmem [shape: f32[48,32], index: 5, kind: input, shape index: {}]
  %s6 = inlined_call_operand.vmem [shape: f32[1,32], index: 6, kind: input, shape index: {}]
  %s7 = inlined_call_operand.vmem [shape: f32[32,32], index: 7, kind: input, shape index: {}]
  %s8 = inlined_call_operand.vmem [shape: f32[1,32], index: 8, kind: input, shape index: {}]
  %s9 = inlined_call_operand.hbm [shape: f32[32,32], index: 9, kind: input, shape index: {}]
  %s10 = inlined_call_operand.vmem [shape: f32[1,32], index: 10, kind: input, shape index: {}]
  %s11 = inlined_call_operand.hbm [shape: f32[32,32], index: 11, kind: input, shape index: {}]
  %s12 = inlined_call_operand.vmem [shape: f32[1,32], index: 12, kind: input, shape index: {}]
  %s13 = inlined_call_operand.vmem [shape: f32[32,1], index: 13, kind: input, shape index: {}]
  %s14 = inlined_call_operand.<no memory space> [shape: f32[1,1], index: 14, kind: input, shape index: {}]
  %s15 = inlined_call_operand.vmem [shape: f32[8,1], index: 15, kind: output, shape index: {}]
  %s16 = sld [smem:[#allocation0]]
  $region86: #{tpu_custom_call.1} parent=0
    _
  %s18 = ssub.s32 1, %s16
  %s19 = scalar_select 0, %s18, %s16
  %v20 = vstv %s14
  %21 = vst [vmem:[#allocation2] sm:$0x1] %v20
  $region1: #{tpu_custom_call.1} parent=0
    #allocation3 [shape = 'u8[4096]{0}', space=vmem, size = 0x1000, scoped, tag = 'input window, operand 0, single buffered']
    #allocation4 [shape = 's32[1]{0}', space=sflag, size = 0x4, scoped, tag = 'scoped memory for tpu_custom_call.1']
    #allocation5 [shape = 'u8[512]{0}', space=vmem, size = 0x400, scoped, tag = 'input window, operand 2, single buffered']
    #allocation6 [shape = 's32[1]{0}', space=sflag, size = 0x4, scoped, tag = 'scoped memory for tpu_custom_call.1']
    #allocation7 [shape = 'u8[16384]{0}', space=vmem, size = 0x4000, scoped, tag = 'input window, operand 9, single buffered']
    #allocation8 [shape = 'u8[16384]{0}', space=vmem, size = 0x4000, scoped, tag = 'input window, operand 11, single buffered']
    #allocation9 [shape = 's32[1]{0}', space=sflag, size = 0x4, scoped, tag = 'scoped memory for tpu_custom_call.1']
    %22 = vsyncpa [#allocation4], 0
    %23 = vsyncpa [#allocation6], 0
    %24 = vsyncpa [#allocation9], 0
    // Predicated region
    $region2: #{tpu_custom_call.1} parent=1 // pred_check
      _
    $region3: #{tpu_custom_call.1} parent=1 // pred_check_branch
      %26 = sbr.rel (0) target = $region5
    $region4: #{tpu_custom_call.1} parent=1 // pred_region
      %s28 = ssub.s32 128, 128
      %29 = vsyncadd [#allocation4], %s28
      %s31 = sshll.u32 [#allocation3], 4
      %s32 = int_to_ptr.vmem [resolvable:$true] %s31
      %34 = dma.hbm_to_vmem [thread:$0]  %s0, 128, %s32, [#allocation4]
    $region5: #{tpu_custom_call.1} parent=1 // pred_fallthru
      _
    // Predicated region
    $region6: #{tpu_custom_call.1} parent=1 // pred_check
      _
    $region7: #{tpu_custom_call.1} parent=1 // pred_check_branch
      %36 = sbr.rel (0) target = $region9
    $region8: #{tpu_custom_call.1} parent=1 // pred_region
      _
    $region9: #{tpu_custom_call.1} parent=1 // pred_fallthru
      _
    // Predicated region
    $region10: #{tpu_custom_call.1} parent=1 // pred_check
      _
    $region11: #{tpu_custom_call.1} parent=1 // pred_check_branch
      %38 = sbr.rel (0) target = $region13
    $region12: #{tpu_custom_call.1} parent=1 // pred_region
      %s40 = ssub.s32 16, 16
      %41 = vsyncadd [#allocation6], %s40
      %s43 = sshll.u32 [#allocation5], 4
      %s44 = int_to_ptr.vmem [resolvable:$true] %s43
      %46 = dma.hbm_to_vmem [thread:$0]  %s2, 16, %s44, [#allocation6]
    $region13: #{tpu_custom_call.1} parent=1 // pred_fallthru
      _
    // Predicated region
    $region14: #{tpu_custom_call.1} parent=1 // pred_check
      _
    $region15: #{tpu_custom_call.1} parent=1 // pred_check_branch
      %48 = sbr.rel (0) target = $region17
    $region16: #{tpu_custom_call.1} parent=1 // pred_region
      _
    $region17: #{tpu_custom_call.1} parent=1 // pred_fallthru
      _
    // Predicated region
    $region18: #{tpu_custom_call.1} parent=1 // pred_check
      _
    $region19: #{tpu_custom_call.1} parent=1 // pred_check_branch
      %50 = sbr.rel (0) target = $region21
    $region20: #{tpu_custom_call.1} parent=1 // pred_region
      _
    $region21: #{tpu_custom_call.1} parent=1 // pred_fallthru
      _
    // Predicated region
    $region22: #{tpu_custom_call.1} parent=1 // pred_check
      _
    $region23: #{tpu_custom_call.1} parent=1 // pred_check_branch
      %52 = sbr.rel (0) target = $region25
    $region24: #{tpu_custom_call.1} parent=1 // pred_region
      _
    $region25: #{tpu_custom_call.1} parent=1 // pred_fallthru
      _
    // Predicated region
    $region26: #{tpu_custom_call.1} parent=1 // pred_check
      _
    $region27: #{tpu_custom_call.1} parent=1 // pred_check_branch
      %54 = sbr.rel (0) target = $region29
    $region28: #{tpu_custom_call.1} parent=1 // pred_region
      _
    $region29: #{tpu_custom_call.1} parent=1 // pred_fallthru
      _
    // Predicated region
    $region30: #{tpu_custom_call.1} parent=1 // pred_check
      _
    $region31: #{tpu_custom_call.1} parent=1 // pred_check_branch
      %56 = sbr.rel (0) target = $region33
    $region32: #{tpu_custom_call.1} parent=1 // pred_region
      _
    $region33: #{tpu_custom_call.1} parent=1 // pred_fallthru
      _
    // Predicated region
    $region34: #{tpu_custom_call.1} parent=1 // pred_check
      _
    $region35: #{tpu_custom_call.1} parent=1 // pred_check_branch
      %58 = sbr.rel (0) target = $region37
    $region36: #{tpu_custom_call.1} parent=1 // pred_region
      _
    $region37: #{tpu_custom_call.1} parent=1 // pred_fallthru
      _
    // Predicated region
    $region38: #{tpu_custom_call.1} parent=1 // pred_check
      _
    $region39: #{tpu_custom_call.1} parent=1 // pred_check_branch
      %60 = sbr.rel (0) target = $region41
    $region40: #{tpu_custom_call.1} parent=1 // pred_region
      %s62 = ssub.s32 512, 512
      %63 = vsyncadd [#allocation6], %s62
      %s64 = sshll.u32 [#allocation7], 4
      %s65 = int_to_ptr.vmem [resolvable:$true] %s64
      %70 = dma.hbm_to_vmem [thread:$0]  %s9, 512, %s65, [#allocation6], 128, 128, 8
    $region41: #{tpu_custom_call.1} parent=1 // pred_fallthru
      _
    // Predicated region
    $region42: #{tpu_custom_call.1} parent=1 // pred_check
      _
    $region43: #{tpu_custom_call.1} parent=1 // pred_check_branch
      %72 = sbr.rel (0) target = $region45
    $region44: #{tpu_custom_call.1} parent=1 // pred_region
      _
    $region45: #{tpu_custom_call.1} parent=1 // pred_fallthru
      _
    // Predicated region
    $region46: #{tpu_custom_call.1} parent=1 // pred_check
      _
    $region47: #{tpu_custom_call.1} parent=1 // pred_check_branch
      %74 = sbr.rel (0) target = $region49
    $region48: #{tpu_custom_call.1} parent=1 // pred_region
      %s76 = ssub.s32 512, 512
      %77 = vsyncadd [#allocation9], %s76
      %s78 = sshll.u32 [#allocation8], 4
      %s79 = int_to_ptr.vmem [resolvable:$true] %s78
      %84 = dma.hbm_to_vmem [thread:$0]  %s11, 512, %s79, [#allocation9], 128, 128, 8
    $region49: #{tpu_custom_call.1} parent=1 // pred_fallthru
      _
    // Predicated region
    $region50: #{tpu_custom_call.1} parent=1 // pred_check
      _
    $region51: #{tpu_custom_call.1} parent=1 // pred_check_branch
      %86 = sbr.rel (0) target = $region53
    $region52: #{tpu_custom_call.1} parent=1 // pred_region
      _
    $region53: #{tpu_custom_call.1} parent=1 // pred_fallthru
      _
    // Predicated region
    $region54: #{tpu_custom_call.1} parent=1 // pred_check
      _
    $region55: #{tpu_custom_call.1} parent=1 // pred_check_branch
      %88 = sbr.rel (0) target = $region57
    $region56: #{tpu_custom_call.1} parent=1 // pred_region
      _
    $region57: #{tpu_custom_call.1} parent=1 // pred_fallthru
      _
    // Predicated region
    $region58: #{tpu_custom_call.1} parent=1 // pred_check
      _
    $region59: #{tpu_custom_call.1} parent=1 // pred_check_branch
      %90 = sbr.rel (0) target = $region61
    $region60: #{tpu_custom_call.1} parent=1 // pred_region
      _
    $region61: #{tpu_custom_call.1} parent=1 // pred_fallthru
      _
    // Predicated region
    $region62: #{tpu_custom_call.1} parent=1 // pred_check
      _
    $region63: #{tpu_custom_call.1} parent=1 // pred_check_branch
      %92 = sbr.rel (0) target = $region65
    $region64: #{tpu_custom_call.1} parent=1 // pred_region
      %93 = dma.done [#allocation4], 128
    $region65: #{tpu_custom_call.1} parent=1 // pred_fallthru
      _
    // Predicated region
    $region66: #{tpu_custom_call.1} parent=1 // pred_check
      _
    $region67: #{tpu_custom_call.1} parent=1 // pred_check_branch
      %95 = sbr.rel (0) target = $region69
    $region68: #{tpu_custom_call.1} parent=1 // pred_region
      %96 = dma.done [#allocation6], 16
    $region69: #{tpu_custom_call.1} parent=1 // pred_fallthru
      _
    // Predicated region
    $region70: #{tpu_custom_call.1} parent=1 // pred_check
      _
    $region71: #{tpu_custom_call.1} parent=1 // pred_check_branch
      %98 = sbr.rel (0) target = $region73
    $region72: #{tpu_custom_call.1} parent=1 // pred_region
      %99 = dma.done [#allocation6], 512
    $region73: #{tpu_custom_call.1} parent=1 // pred_fallthru
      _
    // Predicated region
    $region74: #{tpu_custom_call.1} parent=1 // pred_check
      _
    $region75: #{tpu_custom_call.1} parent=1 // pred_check_branch
      %101 = sbr.rel (0) target = $region77
    $region76: #{tpu_custom_call.1} parent=1 // pred_region
      %102 = dma.done [#allocation9], 512
    $region77: #{tpu_custom_call.1} parent=1 // pred_fallthru
      _
    %v103 = vld [vmem:[#allocation3] sm:$0xff]
    %v104 = vld [vmem:[%s1] sm:$0xff]
    %v105 = vld [vmem:[%s1 + $0x8] sm:$0xff]
    %v106 = vld [vmem:[%s1 + $0x10] sm:$0xff]
    %v107 = vld [vmem:[%s1 + $0x18] sm:$0xff]
    %v108 = vld [vmem:[%s1 + $0x20] sm:$0xff]
    %v109 = vld [vmem:[%s1 + $0x28] sm:$0xff]
    %v110 = vld [vmem:[#allocation5] sm:$0x1]
    %v112 = vlaneseq
    %v113 = vshrl.u32 %v112, 7
    %v114 = vsub.s32 0, %v113
    %v115 = vrot.slane %v110, %v114
    %vm117 = vcmask 392192
    %v119 = vsel %vm117, %v103, 0
    %121 = vmatprep.subr.mxu0 0.0
    %122 = vmatpush1.msra.mxu0 %v104
    %123 = vmatprep.subr.mxu0 0.0
    %124 = vmatpush1.msra.mxu0 %v105
    %125 = vmatprep.subr.mxu0 0.0
    %126 = vmatpush1.msra.mxu0 %v106
    %127 = vmatprep.subr.mxu0 0.0
    %128 = vmatpush1.msra.mxu0 %v107
    %129 = vmatprep.subr.mxu0 0.0
    %130 = vmatpush1.msra.mxu0 %v108
    %131 = vmatprep.subr.mxu0 0.0
    %132 = vmatpush1.msra.mxu0 %v109
    %133 = vmatprep.subr.mxu0 0.0
    %134 = vmatpush1.msra.mxu0 0.0
    %135 = vmatprep.subr.mxu0 0.0
    %136 = vmatpush1.msra.mxu0 0.0
    %137 = vmatprep.subr.mxu0 0.0
    %138 = vmatpush1.msra.mxu0 0.0
    %139 = vmatprep.subr.mxu0 0.0
    %140 = vmatpush1.msra.mxu0 0.0
    %141 = vmatprep.subr.mxu0 0.0
    %142 = vmatpush1.msra.mxu0 0.0
    %143 = vmatprep.subr.mxu0 0.0
    %144 = vmatpush1.msra.mxu0 0.0
    %145 = vmatprep.subr.mxu0 0.0
    %146 = vmatpush1.msra.mxu0 0.0
    %147 = vmatprep.subr.mxu0 0.0
    %148 = vmatpush1.msra.mxu0 0.0
    %149 = vmatprep.subr.mxu0 0.0
    %150 = vmatpush1.msra.mxu0 0.0
    %151 = vmatprep.subr.mxu0 0.0
    %152 = vmatpush1.msra.mxu0 0.0
    %153 = vmatprep.subr.mxu0 0.0
    %154 = vmatpush1.msra.mxu0 0.0
    %155 = vmatprep.subr.mxu0 0.0
    %156 = vmatpush1.msra.mxu0 0.0
    %157 = vmatprep.subr.mxu0 0.0
    %158 = vmatpush1.msra.mxu0 0.0
    %159 = vmatprep.subr.mxu0 0.0
    %160 = vmatpush1.msra.mxu0 0.0
    %161 = vmatprep.subr.mxu0 0.0
    %162 = vmatpush1.msra.mxu0 0.0
    %163 = vmatprep.subr.mxu0 0.0
    %164 = vmatpush1.msra.mxu0 0.0
    %165 = vmatprep.subr.mxu0 0.0
    %166 = vmatpush1.msra.mxu0 0.0
    %167 = vmatprep.subr.mxu0 0.0
    %168 = vmatpush1.msra.mxu0 0.0
    %169 = vmatprep.subr.mxu0 0.0
    %170 = vmatpush1.msra.mxu0 0.0
    %171 = vmatprep.subr.mxu0 0.0
    %172 = vmatpush1.msra.mxu0 0.0
    %173 = vmatprep.subr.mxu0 0.0
    %174 = vmatpush1.msra.mxu0 0.0
    %175 = vmatprep.subr.mxu0 0.0
    %176 = vmatpush1.msra.mxu0 0.0
    %177 = vmatprep.subr.mxu0 0.0
    %178 = vmatpush1.msra.mxu0 0.0
    %179 = vmatprep.subr.mxu0 0.0
    %180 = vmatpush1.msra.mxu0 0.0
    %181 = vmatprep.subr.mxu0 0.0
    %182 = vmatpush1.msra.mxu0 0.0
    %183 = vmatprep.subr.mxu0 0.0
    %184 = vmatpush1.msra.mxu0 0.0
    %185 = vmatprep.mubr.f32.mxu0 0.0
    %186 = vmatmul.mubr.f32.gmra.mrb[0].mxu0 %v119
    %v187 = vpop.f32.mrb[0].mxu0
    %v188 = vadd.f32 %v115, %v187
    %v189 = vpop.f32.mrb[0].mxu0
    %190 = vdwg.mxu0
    %v191 = vmax.f32 %v188, 0.0
    %v192 = vld [vmem:[%s3] sm:$0xff]
    %v193 = vld [vmem:[%s3 + $0x8] sm:$0xff]
    %v194 = vld [vmem:[%s3 + $0x10] sm:$0xff]
    %v195 = vld [vmem:[%s3 + $0x18] sm:$0xff]
    %v196 = vld [vmem:[%s3 + $0x20] sm:$0xff]
    %v197 = vld [vmem:[%s3 + $0x28] sm:$0xff]
    %v198 = vld [vmem:[%s4] sm:$0x1]
    %v200 = vlaneseq
    %v201 = vshrl.u32 %v200, 7
    %v202 = vsub.s32 0, %v201
    %v203 = vrot.slane %v198, %v202
    %v206 = vsel %vm117, %v191, 0
    %208 = vmatprep.subr.mxu0 0.0
    %209 = vmatpush1.msra.mxu0 %v192
    %210 = vmatprep.subr.mxu0 0.0
    %211 = vmatpush1.msra.mxu0 %v193
    %212 = vmatprep.subr.mxu0 0.0
    %213 = vmatpush1.msra.mxu0 %v194
    %214 = vmatprep.subr.mxu0 0.0
    %215 = vmatpush1.msra.mxu0 %v195
    %216 = vmatprep.subr.mxu0 0.0
    %217 = vmatpush1.msra.mxu0 %v196
    %218 = vmatprep.subr.mxu0 0.0
    %219 = vmatpush1.msra.mxu0 %v197
    %220 = vmatprep.subr.mxu0 0.0
    %221 = vmatpush1.msra.mxu0 0.0
    %222 = vmatprep.subr.mxu0 0.0
    %223 = vmatpush1.msra.mxu0 0.0
    %224 = vmatprep.subr.mxu0 0.0
    %225 = vmatpush1.msra.mxu0 0.0
    %226 = vmatprep.subr.mxu0 0.0
    %227 = vmatpush1.msra.mxu0 0.0
    %228 = vmatprep.subr.mxu0 0.0
    %229 = vmatpush1.msra.mxu0 0.0
    %230 = vmatprep.subr.mxu0 0.0
    %231 = vmatpush1.msra.mxu0 0.0
    %232 = vmatprep.subr.mxu0 0.0
    %233 = vmatpush1.msra.mxu0 0.0
    %234 = vmatprep.subr.mxu0 0.0
    %235 = vmatpush1.msra.mxu0 0.0
    %236 = vmatprep.subr.mxu0 0.0
    %237 = vmatpush1.msra.mxu0 0.0
    %238 = vmatprep.subr.mxu0 0.0
    %239 = vmatpush1.msra.mxu0 0.0
    %240 = vmatprep.subr.mxu0 0.0
    %241 = vmatpush1.msra.mxu0 0.0
    %242 = vmatprep.subr.mxu0 0.0
    %243 = vmatpush1.msra.mxu0 0.0
    %244 = vmatprep.subr.mxu0 0.0
    %245 = vmatpush1.msra.mxu0 0.0
    %246 = vmatprep.subr.mxu0 0.0
    %247 = vmatpush1.msra.mxu0 0.0
    %248 = vmatprep.subr.mxu0 0.0
    %249 = vmatpush1.msra.mxu0 0.0
    %250 = vmatprep.subr.mxu0 0.0
    %251 = vmatpush1.msra.mxu0 0.0
    %252 = vmatprep.subr.mxu0 0.0
    %253 = vmatpush1.msra.mxu0 0.0
    %254 = vmatprep.subr.mxu0 0.0
    %255 = vmatpush1.msra.mxu0 0.0
    %256 = vmatprep.subr.mxu0 0.0
    %257 = vmatpush1.msra.mxu0 0.0
    %258 = vmatprep.subr.mxu0 0.0
    %259 = vmatpush1.msra.mxu0 0.0
    %260 = vmatprep.subr.mxu0 0.0
    %261 = vmatpush1.msra.mxu0 0.0
    %262 = vmatprep.subr.mxu0 0.0
    %263 = vmatpush1.msra.mxu0 0.0
    %264 = vmatprep.subr.mxu0 0.0
    %265 = vmatpush1.msra.mxu0 0.0
    %266 = vmatprep.subr.mxu0 0.0
    %267 = vmatpush1.msra.mxu0 0.0
    %268 = vmatprep.subr.mxu0 0.0
    %269 = vmatpush1.msra.mxu0 0.0
    %270 = vmatprep.subr.mxu0 0.0
    %271 = vmatpush1.msra.mxu0 0.0
    %272 = vmatprep.mubr.f32.mxu0 0.0
    %273 = vmatmul.mubr.f32.gmra.mrb[0].mxu0 %v206
    %v274 = vpop.f32.mrb[0].mxu0
    %v275 = vadd.f32 %v203, %v274
    %v276 = vpop.f32.mrb[0].mxu0
    %277 = vdwg.mxu0
    %v278 = vmax.f32 %v275, 0.0
    %v279 = vld [vmem:[%s5] sm:$0xff]
    %v280 = vld [vmem:[%s5 + $0x8] sm:$0xff]
    %v281 = vld [vmem:[%s5 + $0x10] sm:$0xff]
    %v282 = vld [vmem:[%s5 + $0x18] sm:$0xff]
    %v283 = vld [vmem:[%s5 + $0x20] sm:$0xff]
    %v284 = vld [vmem:[%s5 + $0x28] sm:$0xff]
    %v285 = vld [vmem:[%s6] sm:$0x1]
    %v287 = vlaneseq
    %v288 = vshrl.u32 %v287, 7
    %v289 = vsub.s32 0, %v288
    %v290 = vrot.slane %v285, %v289
    %v293 = vsel %vm117, %v278, 0
    %295 = vmatprep.subr.mxu0 0.0
    %296 = vmatpush1.msra.mxu0 %v279
    %297 = vmatprep.subr.mxu0 0.0
    %298 = vmatpush1.msra.mxu0 %v280
    %299 = vmatprep.subr.mxu0 0.0
    %300 = vmatpush1.msra.mxu0 %v281
    %301 = vmatprep.subr.mxu0 0.0
    %302 = vmatpush1.msra.mxu0 %v282
    %303 = vmatprep.subr.mxu0 0.0
    %304 = vmatpush1.msra.mxu0 %v283
    %305 = vmatprep.subr.mxu0 0.0
    %306 = vmatpush1.msra.mxu0 %v284
    %307 = vmatprep.subr.mxu0 0.0
    %308 = vmatpush1.msra.mxu0 0.0
    %309 = vmatprep.subr.mxu0 0.0
    %310 = vmatpush1.msra.mxu0 0.0
    %311 = vmatprep.subr.mxu0 0.0
    %312 = vmatpush1.msra.mxu0 0.0
    %313 = vmatprep.subr.mxu0 0.0
    %314 = vmatpush1.msra.mxu0 0.0
    %315 = vmatprep.subr.mxu0 0.0
    %316 = vmatpush1.msra.mxu0 0.0
    %317 = vmatprep.subr.mxu0 0.0
    %318 = vmatpush1.msra.mxu0 0.0
    %319 = vmatprep.subr.mxu0 0.0
    %320 = vmatpush1.msra.mxu0 0.0
    %321 = vmatprep.subr.mxu0 0.0
    %322 = vmatpush1.msra.mxu0 0.0
    %323 = vmatprep.subr.mxu0 0.0
    %324 = vmatpush1.msra.mxu0 0.0
    %325 = vmatprep.subr.mxu0 0.0
    %326 = vmatpush1.msra.mxu0 0.0
    %327 = vmatprep.subr.mxu0 0.0
    %328 = vmatpush1.msra.mxu0 0.0
    %329 = vmatprep.subr.mxu0 0.0
    %330 = vmatpush1.msra.mxu0 0.0
    %331 = vmatprep.subr.mxu0 0.0
    %332 = vmatpush1.msra.mxu0 0.0
    %333 = vmatprep.subr.mxu0 0.0
    %334 = vmatpush1.msra.mxu0 0.0
    %335 = vmatprep.subr.mxu0 0.0
    %336 = vmatpush1.msra.mxu0 0.0
    %337 = vmatprep.subr.mxu0 0.0
    %338 = vmatpush1.msra.mxu0 0.0
    %339 = vmatprep.subr.mxu0 0.0
    %340 = vmatpush1.msra.mxu0 0.0
    %341 = vmatprep.subr.mxu0 0.0
    %342 = vmatpush1.msra.mxu0 0.0
    %343 = vmatprep.subr.mxu0 0.0
    %344 = vmatpush1.msra.mxu0 0.0
    %345 = vmatprep.subr.mxu0 0.0
    %346 = vmatpush1.msra.mxu0 0.0
    %347 = vmatprep.subr.mxu0 0.0
    %348 = vmatpush1.msra.mxu0 0.0
    %349 = vmatprep.subr.mxu0 0.0
    %350 = vmatpush1.msra.mxu0 0.0
    %351 = vmatprep.subr.mxu0 0.0
    %352 = vmatpush1.msra.mxu0 0.0
    %353 = vmatprep.subr.mxu0 0.0
    %354 = vmatpush1.msra.mxu0 0.0
    %355 = vmatprep.subr.mxu0 0.0
    %356 = vmatpush1.msra.mxu0 0.0
    %357 = vmatprep.subr.mxu0 0.0
    %358 = vmatpush1.msra.mxu0 0.0
    %359 = vmatprep.mubr.f32.mxu0 0.0
    %360 = vmatmul.mubr.f32.gmra.mrb[0].mxu0 %v293
    %v361 = vpop.f32.mrb[0].mxu0
    %v362 = vadd.f32 %v290, %v361
    %v363 = vpop.f32.mrb[0].mxu0
    %364 = vdwg.mxu0
    %v365 = vmax.f32 %v362, 0.0
    %v366 = vld [vmem:[%s7] sm:$0xff]
    %v367 = vld [vmem:[%s7 + $0x8] sm:$0xff]
    %v368 = vld [vmem:[%s7 + $0x10] sm:$0xff]
    %v369 = vld [vmem:[%s7 + $0x18] sm:$0xff]
    %v370 = vld [vmem:[%s8] sm:$0x1]
    %v372 = vlaneseq
    %v373 = vshrl.u32 %v372, 7
    %v374 = vsub.s32 0, %v373
    %v375 = vrot.slane %v370, %v374
    %vm377 = vcmask 261120
    %v379 = vsel %vm377, %v365, 0
    %381 = vmatprep.subr.mxu0 0.0
    %382 = vmatpush1.msra.mxu0 %v366
    %383 = vmatprep.subr.mxu0 0.0
    %384 = vmatpush1.msra.mxu0 %v367
    %385 = vmatprep.subr.mxu0 0.0
    %386 = vmatpush1.msra.mxu0 %v368
    %387 = vmatprep.subr.mxu0 0.0
    %388 = vmatpush1.msra.mxu0 %v369
    %389 = vmatprep.subr.mxu0 0.0
    %390 = vmatpush1.msra.mxu0 0.0
    %391 = vmatprep.subr.mxu0 0.0
    %392 = vmatpush1.msra.mxu0 0.0
    %393 = vmatprep.subr.mxu0 0.0
    %394 = vmatpush1.msra.mxu0 0.0
    %395 = vmatprep.subr.mxu0 0.0
    %396 = vmatpush1.msra.mxu0 0.0
    %397 = vmatprep.subr.mxu0 0.0
    %398 = vmatpush1.msra.mxu0 0.0
    %399 = vmatprep.subr.mxu0 0.0
    %400 = vmatpush1.msra.mxu0 0.0
    %401 = vmatprep.subr.mxu0 0.0
    %402 = vmatpush1.msra.mxu0 0.0
    %403 = vmatprep.subr.mxu0 0.0
    %404 = vmatpush1.msra.mxu0 0.0
    %405 = vmatprep.subr.mxu0 0.0
    %406 = vmatpush1.msra.mxu0 0.0
    %407 = vmatprep.subr.mxu0 0.0
    %408 = vmatpush1.msra.mxu0 0.0
    %409 = vmatprep.subr.mxu0 0.0
    %410 = vmatpush1.msra.mxu0 0.0
    %411 = vmatprep.subr.mxu0 0.0
    %412 = vmatpush1.msra.mxu0 0.0
    %413 = vmatprep.subr.mxu0 0.0
    %414 = vmatpush1.msra.mxu0 0.0
    %415 = vmatprep.subr.mxu0 0.0
    %416 = vmatpush1.msra.mxu0 0.0
    %417 = vmatprep.subr.mxu0 0.0
    %418 = vmatpush1.msra.mxu0 0.0
    %419 = vmatprep.subr.mxu0 0.0
    %420 = vmatpush1.msra.mxu0 0.0
    %421 = vmatprep.subr.mxu0 0.0
    %422 = vmatpush1.msra.mxu0 0.0
    %423 = vmatprep.subr.mxu0 0.0
    %424 = vmatpush1.msra.mxu0 0.0
    %425 = vmatprep.subr.mxu0 0.0
    %426 = vmatpush1.msra.mxu0 0.0
    %427 = vmatprep.subr.mxu0 0.0
    %428 = vmatpush1.msra.mxu0 0.0
    %429 = vmatprep.subr.mxu0 0.0
    %430 = vmatpush1.msra.mxu0 0.0
    %431 = vmatprep.subr.mxu0 0.0
    %432 = vmatpush1.msra.mxu0 0.0
    %433 = vmatprep.subr.mxu0 0.0
    %434 = vmatpush1.msra.mxu0 0.0
    %435 = vmatprep.subr.mxu0 0.0
    %436 = vmatpush1.msra.mxu0 0.0
    %437 = vmatprep.subr.mxu0 0.0
    %438 = vmatpush1.msra.mxu0 0.0
    %439 = vmatprep.subr.mxu0 0.0
    %440 = vmatpush1.msra.mxu0 0.0
    %441 = vmatprep.subr.mxu0 0.0
    %442 = vmatpush1.msra.mxu0 0.0
    %443 = vmatprep.subr.mxu0 0.0
    %444 = vmatpush1.msra.mxu0 0.0
    %445 = vmatprep.mubr.f32.mxu0 0.0
    %446 = vmatmul.mubr.f32.gmra.mrb[0].mxu0 %v379
    %v447 = vpop.f32.mrb[0].mxu0
    %v448 = vadd.f32 %v375, %v447
    %v449 = vpop.f32.mrb[0].mxu0
    %450 = vdwg.mxu0
    %v451 = vmax.f32 %v448, 0.0
    %v452 = vld [vmem:[#allocation7] sm:$0xff]
    %v453 = vld [vmem:[#allocation7 + $0x8] sm:$0xff]
    %v454 = vld [vmem:[#allocation7 + $0x10] sm:$0xff]
    %v455 = vld [vmem:[#allocation7 + $0x18] sm:$0xff]
    %v456 = vld [vmem:[%s10] sm:$0x1]
    %v458 = vlaneseq
    %v459 = vshrl.u32 %v458, 7
    %v460 = vsub.s32 0, %v459
    %v461 = vrot.slane %v456, %v460
    %v464 = vsel %vm377, %v451, 0
    %466 = vmatprep.subr.mxu0 0.0
    %467 = vmatpush1.msra.mxu0 %v452
    %468 = vmatprep.subr.mxu0 0.0
    %469 = vmatpush1.msra.mxu0 %v453
    %470 = vmatprep.subr.mxu0 0.0
    %471 = vmatpush1.msra.mxu0 %v454
    %472 = vmatprep.subr.mxu0 0.0
    %473 = vmatpush1.msra.mxu0 %v455
    %474 = vmatprep.subr.mxu0 0.0
    %475 = vmatpush1.msra.mxu0 0.0
    %476 = vmatprep.subr.mxu0 0.0
    %477 = vmatpush1.msra.mxu0 0.0
    %478 = vmatprep.subr.mxu0 0.0
    %479 = vmatpush1.msra.mxu0 0.0
    %480 = vmatprep.subr.mxu0 0.0
    %481 = vmatpush1.msra.mxu0 0.0
    %482 = vmatprep.subr.mxu0 0.0
    %483 = vmatpush1.msra.mxu0 0.0
    %484 = vmatprep.subr.mxu0 0.0
    %485 = vmatpush1.msra.mxu0 0.0
    %486 = vmatprep.subr.mxu0 0.0
    %487 = vmatpush1.msra.mxu0 0.0
    %488 = vmatprep.subr.mxu0 0.0
    %489 = vmatpush1.msra.mxu0 0.0
    %490 = vmatprep.subr.mxu0 0.0
    %491 = vmatpush1.msra.mxu0 0.0
    %492 = vmatprep.subr.mxu0 0.0
    %493 = vmatpush1.msra.mxu0 0.0
    %494 = vmatprep.subr.mxu0 0.0
    %495 = vmatpush1.msra.mxu0 0.0
    %496 = vmatprep.subr.mxu0 0.0
    %497 = vmatpush1.msra.mxu0 0.0
    %498 = vmatprep.subr.mxu0 0.0
    %499 = vmatpush1.msra.mxu0 0.0
    %500 = vmatprep.subr.mxu0 0.0
    %501 = vmatpush1.msra.mxu0 0.0
    %502 = vmatprep.subr.mxu0 0.0
    %503 = vmatpush1.msra.mxu0 0.0
    %504 = vmatprep.subr.mxu0 0.0
    %505 = vmatpush1.msra.mxu0 0.0
    %506 = vmatprep.subr.mxu0 0.0
    %507 = vmatpush1.msra.mxu0 0.0
    %508 = vmatprep.subr.mxu0 0.0
    %509 = vmatpush1.msra.mxu0 0.0
    %510 = vmatprep.subr.mxu0 0.0
    %511 = vmatpush1.msra.mxu0 0.0
    %512 = vmatprep.subr.mxu0 0.0
    %513 = vmatpush1.msra.mxu0 0.0
    %514 = vmatprep.subr.mxu0 0.0
    %515 = vmatpush1.msra.mxu0 0.0
    %516 = vmatprep.subr.mxu0 0.0
    %517 = vmatpush1.msra.mxu0 0.0
    %518 = vmatprep.subr.mxu0 0.0
    %519 = vmatpush1.msra.mxu0 0.0
    %520 = vmatprep.subr.mxu0 0.0
    %521 = vmatpush1.msra.mxu0 0.0
    %522 = vmatprep.subr.mxu0 0.0
    %523 = vmatpush1.msra.mxu0 0.0
    %524 = vmatprep.subr.mxu0 0.0
    %525 = vmatpush1.msra.mxu0 0.0
    %526 = vmatprep.subr.mxu0 0.0
    %527 = vmatpush1.msra.mxu0 0.0
    %528 = vmatprep.subr.mxu0 0.0
    %529 = vmatpush1.msra.mxu0 0.0
    %530 = vmatprep.mubr.f32.mxu0 0.0
    %531 = vmatmul.mubr.f32.gmra.mrb[0].mxu0 %v464
    %v532 = vpop.f32.mrb[0].mxu0
    %v533 = vadd.f32 %v461, %v532
    %v534 = vpop.f32.mrb[0].mxu0
    %535 = vdwg.mxu0
    %v536 = vmax.f32 %v533, 0.0
    %v537 = vld [vmem:[#allocation8] sm:$0xff]
    %v538 = vld [vmem:[#allocation8 + $0x8] sm:$0xff]
    %v539 = vld [vmem:[#allocation8 + $0x10] sm:$0xff]
    %v540 = vld [vmem:[#allocation8 + $0x18] sm:$0xff]
    %v541 = vld [vmem:[%s12] sm:$0x1]
    %v543 = vlaneseq
    %v544 = vshrl.u32 %v543, 7
    %v545 = vsub.s32 0, %v544
    %v546 = vrot.slane %v541, %v545
    %v549 = vsel %vm377, %v536, 0
    %551 = vmatprep.subr.mxu0 0.0
    %552 = vmatpush1.msra.mxu0 %v537
    %553 = vmatprep.subr.mxu0 0.0
    %554 = vmatpush1.msra.mxu0 %v538
    %555 = vmatprep.subr.mxu0 0.0
    %556 = vmatpush1.msra.mxu0 %v539
    %557 = vmatprep.subr.mxu0 0.0
    %558 = vmatpush1.msra.mxu0 %v540
    %559 = vmatprep.subr.mxu0 0.0
    %560 = vmatpush1.msra.mxu0 0.0
    %561 = vmatprep.subr.mxu0 0.0
    %562 = vmatpush1.msra.mxu0 0.0
    %563 = vmatprep.subr.mxu0 0.0
    %564 = vmatpush1.msra.mxu0 0.0
    %565 = vmatprep.subr.mxu0 0.0
    %566 = vmatpush1.msra.mxu0 0.0
    %567 = vmatprep.subr.mxu0 0.0
    %568 = vmatpush1.msra.mxu0 0.0
    %569 = vmatprep.subr.mxu0 0.0
    %570 = vmatpush1.msra.mxu0 0.0
    %571 = vmatprep.subr.mxu0 0.0
    %572 = vmatpush1.msra.mxu0 0.0
    %573 = vmatprep.subr.mxu0 0.0
    %574 = vmatpush1.msra.mxu0 0.0
    %575 = vmatprep.subr.mxu0 0.0
    %576 = vmatpush1.msra.mxu0 0.0
    %577 = vmatprep.subr.mxu0 0.0
    %578 = vmatpush1.msra.mxu0 0.0
    %579 = vmatprep.subr.mxu0 0.0
    %580 = vmatpush1.msra.mxu0 0.0
    %581 = vmatprep.subr.mxu0 0.0
    %582 = vmatpush1.msra.mxu0 0.0
    %583 = vmatprep.subr.mxu0 0.0
    %584 = vmatpush1.msra.mxu0 0.0
    %585 = vmatprep.subr.mxu0 0.0
    %586 = vmatpush1.msra.mxu0 0.0
    %587 = vmatprep.subr.mxu0 0.0
    %588 = vmatpush1.msra.mxu0 0.0
    %589 = vmatprep.subr.mxu0 0.0
    %590 = vmatpush1.msra.mxu0 0.0
    %591 = vmatprep.subr.mxu0 0.0
    %592 = vmatpush1.msra.mxu0 0.0
    %593 = vmatprep.subr.mxu0 0.0
    %594 = vmatpush1.msra.mxu0 0.0
    %595 = vmatprep.subr.mxu0 0.0
    %596 = vmatpush1.msra.mxu0 0.0
    %597 = vmatprep.subr.mxu0 0.0
    %598 = vmatpush1.msra.mxu0 0.0
    %599 = vmatprep.subr.mxu0 0.0
    %600 = vmatpush1.msra.mxu0 0.0
    %601 = vmatprep.subr.mxu0 0.0
    %602 = vmatpush1.msra.mxu0 0.0
    %603 = vmatprep.subr.mxu0 0.0
    %604 = vmatpush1.msra.mxu0 0.0
    %605 = vmatprep.subr.mxu0 0.0
    %606 = vmatpush1.msra.mxu0 0.0
    %607 = vmatprep.subr.mxu0 0.0
    %608 = vmatpush1.msra.mxu0 0.0
    %609 = vmatprep.subr.mxu0 0.0
    %610 = vmatpush1.msra.mxu0 0.0
    %611 = vmatprep.subr.mxu0 0.0
    %612 = vmatpush1.msra.mxu0 0.0
    %613 = vmatprep.subr.mxu0 0.0
    %614 = vmatpush1.msra.mxu0 0.0
    %615 = vmatprep.mubr.f32.mxu0 0.0
    %616 = vmatmul.mubr.f32.gmra.mrb[0].mxu0 %v549
    %v617 = vpop.f32.mrb[0].mxu0
    %v618 = vadd.f32 %v546, %v617
    %v619 = vpop.f32.mrb[0].mxu0
    %620 = vdwg.mxu0
    %v621 = vmax.f32 %v618, 0.0
    %v622 = vld [vmem:[%s13] sm:$0xff]
    %v623 = vld [vmem:[%s13 + $0x8] sm:$0xff]
    %v624 = vld [vmem:[%s13 + $0x10] sm:$0xff]
    %v625 = vld [vmem:[%s13 + $0x18] sm:$0xff]
    %v626 = vld [vmem:[#allocation2] sm:$0x1]
    %v628 = vlaneseq
    %v629 = vshrl.u32 %v628, 7
    %v630 = vsub.s32 0, %v629
    %v631 = vrot.slane %v626, %v630
    %v634 = vsel %vm377, %v621, 0
    %636 = vmatprep.subr.mxu0 0.0
    %637 = vmatpush1.msra.mxu0 %v622
    %638 = vmatprep.subr.mxu0 0.0
    %639 = vmatpush1.msra.mxu0 %v623
    %640 = vmatprep.subr.mxu0 0.0
    %641 = vmatpush1.msra.mxu0 %v624
    %642 = vmatprep.subr.mxu0 0.0
    %643 = vmatpush1.msra.mxu0 %v625
    %644 = vmatprep.subr.mxu0 0.0
    %645 = vmatpush1.msra.mxu0 0.0
    %646 = vmatprep.subr.mxu0 0.0
    %647 = vmatpush1.msra.mxu0 0.0
    %648 = vmatprep.subr.mxu0 0.0
    %649 = vmatpush1.msra.mxu0 0.0
    %650 = vmatprep.subr.mxu0 0.0
    %651 = vmatpush1.msra.mxu0 0.0
    %652 = vmatprep.subr.mxu0 0.0
    %653 = vmatpush1.msra.mxu0 0.0
    %654 = vmatprep.subr.mxu0 0.0
    %655 = vmatpush1.msra.mxu0 0.0
    %656 = vmatprep.subr.mxu0 0.0
    %657 = vmatpush1.msra.mxu0 0.0
    %658 = vmatprep.subr.mxu0 0.0
    %659 = vmatpush1.msra.mxu0 0.0
    %660 = vmatprep.subr.mxu0 0.0
    %661 = vmatpush1.msra.mxu0 0.0
    %662 = vmatprep.subr.mxu0 0.0
    %663 = vmatpush1.msra.mxu0 0.0
    %664 = vmatprep.subr.mxu0 0.0
    %665 = vmatpush1.msra.mxu0 0.0
    %666 = vmatprep.subr.mxu0 0.0
    %667 = vmatpush1.msra.mxu0 0.0
    %668 = vmatprep.subr.mxu0 0.0
    %669 = vmatpush1.msra.mxu0 0.0
    %670 = vmatprep.subr.mxu0 0.0
    %671 = vmatpush1.msra.mxu0 0.0
    %672 = vmatprep.subr.mxu0 0.0
    %673 = vmatpush1.msra.mxu0 0.0
    %674 = vmatprep.subr.mxu0 0.0
    %675 = vmatpush1.msra.mxu0 0.0
    %676 = vmatprep.subr.mxu0 0.0
    %677 = vmatpush1.msra.mxu0 0.0
    %678 = vmatprep.subr.mxu0 0.0
    %679 = vmatpush1.msra.mxu0 0.0
    %680 = vmatprep.subr.mxu0 0.0
    %681 = vmatpush1.msra.mxu0 0.0
    %682 = vmatprep.subr.mxu0 0.0
    %683 = vmatpush1.msra.mxu0 0.0
    %684 = vmatprep.subr.mxu0 0.0
    %685 = vmatpush1.msra.mxu0 0.0
    %686 = vmatprep.subr.mxu0 0.0
    %687 = vmatpush1.msra.mxu0 0.0
    %688 = vmatprep.subr.mxu0 0.0
    %689 = vmatpush1.msra.mxu0 0.0
    %690 = vmatprep.subr.mxu0 0.0
    %691 = vmatpush1.msra.mxu0 0.0
    %692 = vmatprep.subr.mxu0 0.0
    %693 = vmatpush1.msra.mxu0 0.0
    %694 = vmatprep.subr.mxu0 0.0
    %695 = vmatpush1.msra.mxu0 0.0
    %696 = vmatprep.subr.mxu0 0.0
    %697 = vmatpush1.msra.mxu0 0.0
    %698 = vmatprep.subr.mxu0 0.0
    %699 = vmatpush1.msra.mxu0 0.0
    %700 = vmatprep.mubr.f32.mxu0 0.0
    %701 = vmatmul.mubr.f32.gmra.mrb[0].mxu0 %v634
    %v702 = vpop.f32.mrb[0].mxu0
    %v703 = vadd.f32 %v631, %v702
    %v704 = vpop.f32.mrb[0].mxu0
    %705 = vdwg.mxu0
    %vm706 = vcmask 7168
    %707 = vst.msk [vmem:[%s15] sm:$0xff] %vm706, %v703
    // Predicated region
    $region78: #{tpu_custom_call.1} parent=1 // pred_check
      _
    $region79: #{tpu_custom_call.1} parent=1 // pred_check_branch
      %709 = sbr.rel (0) target = $region81
    $region80: #{tpu_custom_call.1} parent=1 // pred_region
      _
    $region81: #{tpu_custom_call.1} parent=1 // pred_fallthru
      _
    // Predicated region
    $region82: #{tpu_custom_call.1} parent=1 // pred_check
      _
    $region83: #{tpu_custom_call.1} parent=1 // pred_check_branch
      %711 = sbr.rel (0) target = $region85
    $region84: #{tpu_custom_call.1} parent=1 // pred_region
      _
    $region85: #{tpu_custom_call.1} parent=1 // pred_fallthru
      _
    %712 = vsyncpa [#allocation4], 1
    %713 = vsyncpa [#allocation6], 1
    %714 = vsyncpa [#allocation9], 1

</llo_original>
